<compile_context>
chip_gen: v6e
topology: v6e:2x2x1
jax: 0.10.0
libtpu: 0.0.40
codegen_flags: <defaults>
</compile_context>

<pallas_src>
from functools import partial

import jax
import jax.numpy as jnp
from jax import lax
from jax.experimental import pallas as pl
from jax.experimental.pallas import tpu as pltpu

EPS = 1e-12


def _cdiv(a, b):
    return -(-a // b)


def power_iter_kernel(w2d_ref, u_ref, u_out_ref, inv_sigma_ref):
    """One power iteration; emits updated u and 1/sigma (weights stay unscaled).

    w2d_ref      : (Cout, Cin*KH*KW) f32   w_bar.view(height, -1)
    u_ref        : (1, Cout)         f32   current left singular vector estimate
    u_out_ref    : (1, Cout)         f32   updated u = l2normalize(W v)
    inv_sigma_ref: (1, 1)            f32   1 / (u_new . (W v))
    """
    w = w2d_ref[...]                                                  # (Cout, Wd)
    u = u_ref[...]                                                    # (1, Cout)

    # v = l2normalize(W^T u)
    wtu = jnp.dot(u, w, preferred_element_type=jnp.float32)           # (1, Wd)
    v = wtu / (jnp.sqrt(jnp.sum(wtu * wtu)) + EPS)

    # W v as an MXU dot (contract the lane dim of both operands).
    wv = lax.dot_general(v, w, (((1,), (1,)), ((), ())),
                         preferred_element_type=jnp.float32)          # (1, Cout)

    u_new = wv / (jnp.sqrt(jnp.sum(wv * wv)) + EPS)                   # l2normalize(W v)
    sigma = jnp.sum(u_new * wv, keepdims=True)                        # (1, 1)

    u_out_ref[...] = u_new
    inv_sigma_ref[...] = 1.0 / sigma


def conv_kernel(x_ref, xh_ref, w_ref, b_ref, inv_s_ref, out_ref, xs_ref, xf_ref,
                *, KH, KW, Wp, Cin):
    """Conv tile: stitch main+halo, fold 9 taps into one K=Cin*KH*KW matmul.

    x_ref    : (Cin, TN)            main tile of the flattened padded frame
    xh_ref   : (Cin, HB)            first HB lanes of the NEXT tile (halo)
    w_ref    : (Cout, KH*KW*Cin)    unscaled folded weight (tap-major, cin-minor), f32
    b_ref    : (Cout, 1)            f32 bias
    inv_s_ref: (1, 1)               f32 1/sigma in SMEM
    out_ref  : (Cout, TN)           lane-dense output block
    xs_ref   : (Cin, TN+HB)         VMEM scratch: contiguous tile + halo
    xf_ref   : (KH*KW*Cin, TN) f32  VMEM scratch: folded (im2col-lite) operand
    """
    tn = out_ref.shape[1]

    # Stitch main tile + halo into one contiguous scratch (two aligned VMEM copies).
    xs_ref[:, :tn] = x_ref[...]
    xs_ref[:, tn:] = xh_ref[...]

    # Fold the KH*KW taps: row block tap*Cin..(tap+1)*Cin is the tap's shifted slice.
    for ki in range(KH):
        for kj in range(KW):
            t = ki * Wp + kj                      # static lane offset of this tap
            tap = ki * KW + kj
            xf_ref[tap * Cin:(tap + 1) * Cin, :] = (
                xs_ref[:, t:t + tn].astype(jnp.float32))

    # Single MXU dot replaces 9 under-filled per-tap dots + 9 accumulate passes.
    acc = jnp.dot(w_ref[...], xf_ref[...], preferred_element_type=jnp.float32)
    out_ref[...] = (acc * inv_s_ref[0, 0] + b_ref[...]).astype(out_ref.dtype)


@partial(jax.jit, static_argnames=("padding", "tile_n", "conv_dtype", "out_dtype"))
def spectral_norm_conv2d(x, w_bar, bias, u, v=None, *, padding=1, tile_n=2048,
                         conv_dtype=jnp.float32, out_dtype=jnp.float32):
    """SpectralNorm(Conv2d).forward. x: NCHW, w_bar: OIHW. Returns (out_NCHW, u_new).

    With power_iterations >= 1 the stored `v` buffer is overwritten before it is read,
    so it never influences the output (matches PyTorch); it is ignored here.
    bf16 conv_dtype/out_dtype halve the HBM streams and are recommended on v5e, v6e
    and v7x alike (MXU is full-rate bf16 with f32 accumulation on all three).
    """
    del v
    N, Cin, H, W = x.shape
    Cout, Cin_w, KH, KW = w_bar.shape
    assert Cin == Cin_w
    assert KH == KW and KH % 2 == 1 and padding == (KH - 1) // 2, \
        "only odd 'same' convolutions with stride 1 are supported"
    # TODO(synk): stride != 1, dilation, and fp8 conv operands (v7x) are not implemented.

    Hp, Wp = H + 2 * padding, W + 2 * padding
    NL = N * Hp * Wp                              # pixels in the padded output frame
    halo = (KH - 1) * Wp + (KW - 1)               # max shift of any kernel tap
    off0 = padding * Wp + padding                 # left zero-halo before frame pixel 0
    HB = 128 * _cdiv(halo, 128)                   # halo block, 128-lane aligned

    # Tile size: multiple of HB (so the halo block lands on a block boundary); cap so
    # the grid has >= 2 steps when the frame is big enough (megacore / v7x 2-TC split).
    # Keep TN <= ~4096: the (Cout, TN) f32 accumulator costs TN/128 vregs.
    TN = HB * _cdiv(tile_n, HB)
    if NL > 2 * HB:
        TN = min(TN, HB * _cdiv(_cdiv(NL, 2), HB))
    NB = _cdiv(NL, TN)
    NLpad = NB * TN

    # --- channel-major flattened padded frame (single cheap XLA pad/transpose pass) ---
    xp = jnp.pad(x, ((0, 0), (0, 0), (padding, padding), (padding, padding)))
    xflat = xp.transpose(1, 0, 2, 3).reshape(Cin, NL).astype(conv_dtype)
    xe = jnp.pad(xflat, ((0, 0), (off0, NLpad + HB - off0 - NL)))

    # --- pass 1: hoisted power iteration -> (u_new, 1/sigma); weights stay unscaled ---
    w2d = w_bar.reshape(Cout, Cin * KH * KW).astype(jnp.float32)
    u2d = u.reshape(1, Cout).astype(jnp.float32)
    u_new, inv_sigma = pl.pallas_call(
        power_iter_kernel,
        out_shape=(jax.ShapeDtypeStruct((1, Cout), jnp.float32),
                   jax.ShapeDtypeStruct((1, 1), jnp.float32)),
        in_specs=[pl.BlockSpec(memory_space=pltpu.MemorySpace.VMEM)] * 2,
        out_specs=(pl.BlockSpec(memory_space=pltpu.MemorySpace.VMEM),
                   pl.BlockSpec(memory_space=pltpu.MemorySpace.VMEM)),
    )(w2d, u2d)

    # Folded weight layout: element [co, (ki*KW+kj)*Cin + ci] = w_bar[co, ci, ki, kj].
    wfold = w_bar.transpose(0, 2, 3, 1).reshape(Cout, KH * KW * Cin).astype(jnp.float32)
    b2d = bias.reshape(Cout, 1).astype(jnp.float32)

    # --- pass 2: gridded conv over the pixel axis (lane-dense, double-buffered) ---
    out2d = pl.pallas_call(
        partial(conv_kernel, KH=KH, KW=KW, Wp=Wp, Cin=Cin),
        out_shape=jax.ShapeDtypeStruct((Cout, NLpad), out_dtype),
        grid=(NB,),
        in_specs=[
            pl.BlockSpec((Cin, TN), lambda i: (0, i)),                       # main tile
            pl.BlockSpec((Cin, HB), lambda i: (0, (i + 1) * (TN // HB))),    # halo block
            pl.BlockSpec((Cout, KH * KW * Cin), lambda i: (0, 0)),           # weights
            pl.BlockSpec((Cout, 1), lambda i: (0, 0)),                       # bias
            pl.BlockSpec(memory_space=pltpu.MemorySpace.SMEM),               # 1/sigma
        ],
        out_specs=pl.BlockSpec((Cout, TN), lambda i: (0, i)),
        scratch_shapes=[pltpu.VMEM((Cin, TN + HB), conv_dtype),
                        pltpu.VMEM((KH * KW * Cin, TN), jnp.float32)],
        compiler_params=pltpu.CompilerParams(
            dimension_semantics=("parallel",)),                              # 2 TCs on v7x
    )(xe, xe, wfold, b2d, inv_sigma)

    # out2d is in padded-frame column layout with an NLpad tail: it MUST be cropped.
    # Crop + NCHW transpose fuse into one XLA pass under jit.
    out = out2d[:, :NL].reshape(Cout, N, Hp, Wp)
    out = out[:, :, padding:padding + H, padding:padding + W].transpose(1, 0, 2, 3)
    return out, u_new.reshape(Cout)


def reference(x, w_bar, bias, u):
    """Pure-JAX reference mirroring the PyTorch SpectralNorm + Conv2d forward."""
    Cout = w_bar.shape[0]
    w2d = w_bar.reshape(Cout, -1)
    v = w2d.T @ u
    v = v / (jnp.linalg.norm(v) + EPS)
    wv = w2d @ v
    u_new = wv / (jnp.linalg.norm(wv) + EPS)
    sigma = jnp.dot(u_new, wv)
    w_sn = w_bar / sigma
    out = lax.conv_general_dilated(
        x, w_sn, window_strides=(1, 1), padding=((1, 1), (1, 1)),
        dimension_numbers=("NCHW", "OIHW", "NCHW"))
    return out + bias.reshape(1, -1, 1, 1), u_new


if __name__ == "__main__":
    key = jax.random.PRNGKey(0)
    k1, k2, k3, k4, k5 = jax.random.split(key, 5)

    # SpectralNorm wrapping Conv2d(in=4, out=8, kernel=3, padding=1)
    N, Cin, H, W = 2, 4, 16, 16
    Cout, KH, KW = 8, 3, 3

    x = jax.random.normal(k1, (N, Cin, H, W), jnp.float32)
    w_bar = jax.random.normal(k2, (Cout, Cin, KH, KW), jnp.float32) * 0.1
    bias = jax.random.normal(k3, (Cout,), jnp.float32) * 0.1

    # _make_params: u ~ N(0,1) size height, v ~ N(0,1) size width, l2-normalized
    u0 = jax.random.normal(k4, (Cout,), jnp.float32)
    u = u0 / (jnp.linalg.norm(u0) + EPS)
    v0 = jax.random.normal(k5, (Cin * KH * KW,), jnp.float32)
    v = v0 / (jnp.linalg.norm(v0) + EPS)

    ref_out, ref_u = reference(x, w_bar, bias, u)

    # f32 operands and output: bit-faithful to the PyTorch module.
    out, u_new = spectral_norm_conv2d(x, w_bar, bias, u, v, padding=1,
                                      tile_n=2048, conv_dtype=jnp.float32,
                                      out_dtype=jnp.float32)
    out = jax.block_until_ready(out)
    u_new = jax.block_until_ready(u_new)
    assert out.shape == (N, Cout, H, W)
    assert jnp.allclose(out, ref_out, atol=1e-3, rtol=1e-3), "f32 output mismatch"
    assert jnp.allclose(u_new, ref_u, atol=1e-3, rtol=1e-3), "updated u mismatch"

    # bf16 input stream + bf16 output stream (recommended on v5e/v6e/v7x): looser
    # tolerance only reflects bf16 quantization of x and of the stored output.
    out_bf, _ = spectral_norm_conv2d(x, w_bar, bias, u, v, padding=1,
                                     tile_n=2048, conv_dtype=jnp.bfloat16,
                                     out_dtype=jnp.bfloat16)
    out_bf = jax.block_until_ready(out_bf)
    assert jnp.allclose(out_bf.astype(jnp.float32), ref_out,
                        atol=5e-2, rtol=5e-2), "bf16 output mismatch"

    print("KERNEL_OK")
</pallas_src>

<mosaic_0001>
module attributes {stable_mosaic.version = 11 : i64} {
  func.func @power_iter_kernel(%arg0: memref<8x36xf32, #tpu.memory_space<vmem>>, %arg1: memref<1x8xf32, #tpu.memory_space<vmem>>, %arg2: memref<1x8xf32, #tpu.memory_space<vmem>>, %arg3: memref<1x1xf32, #tpu.memory_space<vmem>>) attributes {dimension_semantics = [], scalar_prefetch = 0 : i64, scratch_operands = 0 : i64, tpu.core_type = #tpu.core_type<tc>} {
    %c0 = arith.constant 0 : index
    %c0_0 = arith.constant 0 : index
    %0 = vector.load %arg0[%c0, %c0_0] : memref<8x36xf32, #tpu.memory_space<vmem>>, vector<8x36xf32>
    %c0_1 = arith.constant 0 : index
    %c0_2 = arith.constant 0 : index
    %1 = vector.load %arg1[%c0_1, %c0_2] : memref<1x8xf32, #tpu.memory_space<vmem>>, vector<1x8xf32>
    %cst = arith.constant dense<0.000000e+00> : vector<1x36xf32>
    %2 = tpu.matmul %1, %0, %cst {dimension_numbers = #tpu.dot_dimension_numbers<[1], [0], [0], [1], [0, 0, 1, 1], [], []>} : vector<1x8xf32>, vector<8x36xf32>, vector<1x36xf32> -> vector<1x36xf32>
    %3 = arith.mulf %2, %2 : vector<1x36xf32>
    %4 = vector.shape_cast %3 : vector<1x36xf32> to vector<1x1x36xf32>
    %cst_3 = arith.constant dense<0.000000e+00> : vector<1xf32>
    %5 = vector.multi_reduction <add>, %4, %cst_3 [1, 2] : vector<1x1x36xf32> to vector<1xf32>
    %6 = vector.shape_cast %5 : vector<1xf32> to vector<1x1x1xf32>
    %7 = vector.extract %6[0, 0, 0] : f32 from vector<1x1x1xf32>
    %8 = math.sqrt %7 : f32
    %cst_4 = arith.constant 9.99999996E-13 : f32
    %9 = arith.addf %8, %cst_4 : f32
    %10 = vector.broadcast %9 : f32 to vector<1x36xf32>
    %11 = arith.divf %2, %10 : vector<1x36xf32>
    %cst_5 = arith.constant dense<0.000000e+00> : vector<1x8xf32>
    %12 = tpu.matmul %11, %0, %cst_5 {dimension_numbers = #tpu.dot_dimension_numbers<[1], [1], [0], [0], [0, 0, 1, 0], [], []>} : vector<1x36xf32>, vector<8x36xf32>, vector<1x8xf32> -> vector<1x8xf32>
    %13 = arith.mulf %12, %12 : vector<1x8xf32>
    %14 = vector.shape_cast %13 : vector<1x8xf32> to vector<1x1x8xf32>
    %cst_6 = arith.constant dense<0.000000e+00> : vector<1xf32>
    %15 = vector.multi_reduction <add>, %14, %cst_6 [1, 2] : vector<1x1x8xf32> to vector<1xf32>
    %16 = vector.shape_cast %15 : vector<1xf32> to vector<1x1x1xf32>
    %17 = vector.extract %16[0, 0, 0] : f32 from vector<1x1x1xf32>
    %18 = math.sqrt %17 : f32
    %cst_7 = arith.constant 9.99999996E-13 : f32
    %19 = arith.addf %18, %cst_7 : f32
    %20 = vector.broadcast %19 : f32 to vector<1x8xf32>
    %21 = arith.divf %12, %20 : vector<1x8xf32>
    %22 = arith.mulf %21, %12 : vector<1x8xf32>
    %23 = vector.shape_cast %22 : vector<1x8xf32> to vector<1x1x8xf32>
    %cst_8 = arith.constant dense<0.000000e+00> : vector<1xf32>
    %24 = vector.multi_reduction <add>, %23, %cst_8 [1, 2] : vector<1x1x8xf32> to vector<1xf32>
    %25 = vector.shape_cast %24 : vector<1xf32> to vector<1x1x1xf32>
    %26 = vector.extract %25[0, 0, 0] : f32 from vector<1x1x1xf32>
    %27 = vector.broadcast %26 : f32 to vector<1x1xf32>
    %c0_9 = arith.constant 0 : index
    %c0_10 = arith.constant 0 : index
    %28 = vector.load %arg2[%c0_9, %c0_10] : memref<1x8xf32, #tpu.memory_space<vmem>>, vector<1x8xf32>
    tpu.vector_store %arg2[%c0_9, %c0_10], %21 {strides = array<i32>} : memref<1x8xf32, #tpu.memory_space<vmem>>, vector<1x8xf32>,
    %cst_11 = arith.constant 1.000000e+00 : f32
    %29 = vector.broadcast %cst_11 : f32 to vector<1x1xf32>
    %30 = arith.divf %29, %27 : vector<1x1xf32>
    %c0_12 = arith.constant 0 : index
    %c0_13 = arith.constant 0 : index
    %31 = vector.load %arg3[%c0_12, %c0_13] : memref<1x1xf32, #tpu.memory_space<vmem>>, vector<1x1xf32>
    tpu.vector_store %arg3[%c0_12, %c0_13], %30 {strides = array<i32>} : memref<1x1xf32, #tpu.memory_space<vmem>>, vector<1x1xf32>,
    return
  }
}

module attributes {stable_mosaic.version = 11 : i64} {
  func.func @conv_kernel(%arg0: i32, %arg1: memref<4x384xf32, #tpu.memory_space<vmem>>, %arg2: memref<4x128xf32, #tpu.memory_space<vmem>>, %arg3: memref<8x36xf32, #tpu.memory_space<vmem>>, %arg4: memref<8x1xf32, #tpu.memory_space<vmem>>, %arg5: memref<1x1xf32, #tpu.memory_space<smem>>, %arg6: memref<8x384xf32, #tpu.memory_space<vmem>>, %arg7: memref<4x512xf32, #tpu.memory_space<vmem>>, %arg8: memref<36x384xf32, #tpu.memory_space<vmem>>) attributes {dimension_semantics = [#tpu.dimension_semantics<parallel>], iteration_bounds = array<i64: 2>, scalar_prefetch = 0 : i64, scratch_operands = 2 : i64, tpu.core_type = #tpu.core_type<tc>, window_params = [{transform_indices = @transform_0, window_bounds = array<i64: 4, 384>}, {transform_indices = @transform_1, window_bounds = array<i64: 4, 128>}, {pipeline_mode = #tpu.pipeline_mode<synchronous>, transform_indices = @transform_2, window_bounds = array<i64: 8, 36>}, {pipeline_mode = #tpu.pipeline_mode<synchronous>, transform_indices = @transform_3, window_bounds = array<i64: 8, 1>}, {transform_indices = @transform_4, window_bounds = array<i64: 1, 1>}, {transform_indices = @transform_5, window_bounds = array<i64: 8, 384>}]} {
    %c0 = arith.constant 0 : index
    %c0_0 = arith.constant 0 : index
    %0 = vector.load %arg1[%c0, %c0_0] : memref<4x384xf32, #tpu.memory_space<vmem>>, vector<4x384xf32>
    %c0_1 = arith.constant 0 : index
    %c0_2 = arith.constant 0 : index
    %1 = vector.load %arg7[%c0_1, %c0_2] : memref<4x512xf32, #tpu.memory_space<vmem>>, vector<4x384xf32>
    tpu.vector_store %arg7[%c0_1, %c0_2], %0 {strides = array<i32>} : memref<4x512xf32, #tpu.memory_space<vmem>>, vector<4x384xf32>,
    %c0_3 = arith.constant 0 : index
    %c0_4 = arith.constant 0 : index
    %2 = vector.load %arg2[%c0_3, %c0_4] : memref<4x128xf32, #tpu.memory_space<vmem>>, vector<4x128xf32>
    %c0_5 = arith.constant 0 : index
    %c384 = arith.constant 384 : index
    %3 = vector.load %arg7[%c0_5, %c384] : memref<4x512xf32, #tpu.memory_space<vmem>>, vector<4x128xf32>
    tpu.vector_store %arg7[%c0_5, %c384], %2 {strides = array<i32>} : memref<4x512xf32, #tpu.memory_space<vmem>>, vector<4x128xf32>,
    %c0_6 = arith.constant 0 : index
    %c0_7 = arith.constant 0 : index
    %4 = vector.load %arg7[%c0_6, %c0_7] : memref<4x512xf32, #tpu.memory_space<vmem>>, vector<4x384xf32>
    %c0_8 = arith.constant 0 : index
    %c0_9 = arith.constant 0 : index
    %5 = vector.load %arg8[%c0_8, %c0_9] : memref<36x384xf32, #tpu.memory_space<vmem>>, vector<4x384xf32>
    tpu.vector_store %arg8[%c0_8, %c0_9], %4 {strides = array<i32>} : memref<36x384xf32, #tpu.memory_space<vmem>>, vector<4x384xf32>,
    %c0_10 = arith.constant 0 : index
    %c1 = arith.constant 1 : index
    %6 = vector.load %arg7[%c0_10, %c1] : memref<4x512xf32, #tpu.memory_space<vmem>>, vector<4x384xf32>
    %c4 = arith.constant 4 : index
    %c0_11 = arith.constant 0 : index
    %7 = vector.load %arg8[%c4, %c0_11] : memref<36x384xf32, #tpu.memory_space<vmem>>, vector<4x384xf32>
    tpu.vector_store %arg8[%c4, %c0_11], %6 {strides = array<i32>} : memref<36x384xf32, #tpu.memory_space<vmem>>, vector<4x384xf32>,
    %c0_12 = arith.constant 0 : index
    %c2 = arith.constant 2 : index
    %8 = vector.load %arg7[%c0_12, %c2] : memref<4x512xf32, #tpu.memory_space<vmem>>, vector<4x384xf32>
    %c8 = arith.constant 8 : index
    %c0_13 = arith.constant 0 : index
    %9 = vector.load %arg8[%c8, %c0_13] : memref<36x384xf32, #tpu.memory_space<vmem>>, vector<4x384xf32>
    tpu.vector_store %arg8[%c8, %c0_13], %8 {strides = array<i32>} : memref<36x384xf32, #tpu.memory_space<vmem>>, vector<4x384xf32>,
    %c0_14 = arith.constant 0 : index
    %c18 = arith.constant 18 : index
    %10 = vector.load %arg7[%c0_14, %c18] : memref<4x512xf32, #tpu.memory_space<vmem>>, vector<4x384xf32>
    %c12 = arith.constant 12 : index
    %c0_15 = arith.constant 0 : index
    %11 = vector.load %arg8[%c12, %c0_15] : memref<36x384xf32, #tpu.memory_space<vmem>>, vector<4x384xf32>
    tpu.vector_store %arg8[%c12, %c0_15], %10 {strides = array<i32>} : memref<36x384xf32, #tpu.memory_space<vmem>>, vector<4x384xf32>,
    %c0_16 = arith.constant 0 : index
    %c19 = arith.constant 19 : index
    %12 = vector.load %arg7[%c0_16, %c19] : memref<4x512xf32, #tpu.memory_space<vmem>>, vector<4x384xf32>
    %c16 = arith.constant 16 : index
    %c0_17 = arith.constant 0 : index
    %13 = vector.load %arg8[%c16, %c0_17] : memref<36x384xf32, #tpu.memory_space<vmem>>, vector<4x384xf32>
    tpu.vector_store %arg8[%c16, %c0_17], %12 {strides = array<i32>} : memref<36x384xf32, #tpu.memory_space<vmem>>, vector<4x384xf32>,
    %c0_18 = arith.constant 0 : index
    %c20 = arith.constant 20 : index
    %14 = vector.load %arg7[%c0_18, %c20] : memref<4x512xf32, #tpu.memory_space<vmem>>, vector<4x384xf32>
    %c20_19 = arith.constant 20 : index
    %c0_20 = arith.constant 0 : index
    %15 = vector.load %arg8[%c20_19, %c0_20] : memref<36x384xf32, #tpu.memory_space<vmem>>, vector<4x384xf32>
    tpu.vector_store %arg8[%c20_19, %c0_20], %14 {strides = array<i32>} : memref<36x384xf32, #tpu.memory_space<vmem>>, vector<4x384xf32>,
    %c0_21 = arith.constant 0 : index
    %c36 = arith.constant 36 : index
    %16 = vector.load %arg7[%c0_21, %c36] : memref<4x512xf32, #tpu.memory_space<vmem>>, vector<4x384xf32>
    %c24 = arith.constant 24 : index
    %c0_22 = arith.constant 0 : index
    %17 = vector.load %arg8[%c24, %c0_22] : memref<36x384xf32, #tpu.memory_space<vmem>>, vector<4x384xf32>
    tpu.vector_store %arg8[%c24, %c0_22], %16 {strides = array<i32>} : memref<36x384xf32, #tpu.memory_space<vmem>>, vector<4x384xf32>,
    %c0_23 = arith.constant 0 : index
    %c37 = arith.constant 37 : index
    %18 = vector.load %arg7[%c0_23, %c37] : memref<4x512xf32, #tpu.memory_space<vmem>>, vector<4x384xf32>
    %c28 = arith.constant 28 : index
    %c0_24 = arith.constant 0 : index
    %19 = vector.load %arg8[%c28, %c0_24] : memref<36x384xf32, #tpu.memory_space<vmem>>, vector<4x384xf32>
    tpu.vector_store %arg8[%c28, %c0_24], %18 {strides = array<i32>} : memref<36x384xf32, #tpu.memory_space<vmem>>, vector<4x384xf32>,
    %c0_25 = arith.constant 0 : index
    %c38 = arith.constant 38 : index
    %20 = vector.load %arg7[%c0_25, %c38] : memref<4x512xf32, #tpu.memory_space<vmem>>, vector<4x384xf32>
    %c32 = arith.constant 32 : index
    %c0_26 = arith.constant 0 : index
    %21 = vector.load %arg8[%c32, %c0_26] : memref<36x384xf32, #tpu.memory_space<vmem>>, vector<4x384xf32>
    tpu.vector_store %arg8[%c32, %c0_26], %20 {strides = array<i32>} : memref<36x384xf32, #tpu.memory_space<vmem>>, vector<4x384xf32>,
    %c0_27 = arith.constant 0 : index
    %c0_28 = arith.constant 0 : index
    %22 = vector.load %arg3[%c0_27, %c0_28] : memref<8x36xf32, #tpu.memory_space<vmem>>, vector<8x36xf32>
    %c0_29 = arith.constant 0 : index
    %c0_30 = arith.constant 0 : index
    %23 = vector.load %arg8[%c0_29, %c0_30] : memref<36x384xf32, #tpu.memory_space<vmem>>, vector<36x384xf32>
    %cst = arith.constant dense<0.000000e+00> : vector<8x384xf32>
    %24 = tpu.matmul %22, %23, %cst {dimension_numbers = #tpu.dot_dimension_numbers<[1], [0], [0], [1], [0, 0, 1, 1], [], []>} : vector<8x36xf32>, vector<36x384xf32>, vector<8x384xf32> -> vector<8x384xf32>
    %c0_31 = arith.constant 0 : index
    %c0_32 = arith.constant 0 : index
    %25 = memref.load %arg5[%c0_31, %c0_32] : memref<1x1xf32, #tpu.memory_space<smem>>
    %26 = vector.broadcast %25 : f32 to vector<8x384xf32>
    %27 = arith.mulf %24, %26 : vector<8x384xf32>
    %c0_33 = arith.constant 0 : index
    %c0_34 = arith.constant 0 : index
    %28 = vector.load %arg4[%c0_33, %c0_34] : memref<8x1xf32, #tpu.memory_space<vmem>>, vector<8x1xf32>
    %29 = vector.broadcast %28 : vector<8x1xf32> to vector<8x384xf32>
    %30 = arith.addf %27, %29 : vector<8x384xf32>
    %c0_35 = arith.constant 0 : index
    %c0_36 = arith.constant 0 : index
    %31 = vector.load %arg6[%c0_35, %c0_36] : memref<8x384xf32, #tpu.memory_space<vmem>>, vector<8x384xf32>
    tpu.vector_store %arg6[%c0_35, %c0_36], %30 {strides = array<i32>} : memref<8x384xf32, #tpu.memory_space<vmem>>, vector<8x384xf32>,
    return
  }
  func.func @transform_0(%arg0: i32) -> (i32, i32) {
    %c0_i32 = arith.constant 0 : i32
    %c0_i32_0 = arith.constant 0 : i32
    return %c0_i32, %arg0 : i32, i32
  }
  func.func @transform_1(%arg0: i32) -> (i32, i32) {
    %c1_i32 = arith.constant 1 : i32
    %0 = arith.addi %arg0, %c1_i32 : i32
    %c3_i32 = arith.constant 3 : i32
    %1 = arith.muli %0, %c3_i32 : i32
    %c0_i32 = arith.constant 0 : i32
    %c0_i32_0 = arith.constant 0 : i32
    return %c0_i32, %1 : i32, i32
  }
  func.func @transform_2(%arg0: i32) -> (i32, i32) {
    %c0_i32 = arith.constant 0 : i32
    %c0_i32_0 = arith.constant 0 : i32
    %c0_i32_1 = arith.constant 0 : i32
    return %c0_i32, %c0_i32_0 : i32, i32
  }
  func.func @transform_3(%arg0: i32) -> (i32, i32) {
    %c0_i32 = arith.constant 0 : i32
    %c0_i32_0 = arith.constant 0 : i32
    %c0_i32_1 = arith.constant 0 : i32
    return %c0_i32, %c0_i32_0 : i32, i32
  }
  func.func @transform_4(%arg0: i32) -> (i32, i32) {
    %c0_i32 = arith.constant 0 : i32
    %c0_i32_0 = arith.constant 0 : i32
    %c0_i32_1 = arith.constant 0 : i32
    return %c0_i32, %c0_i32_0 : i32, i32
  }
  func.func @transform_5(%arg0: i32) -> (i32, i32) {
    %c0_i32 = arith.constant 0 : i32
    %c0_i32_0 = arith.constant 0 : i32
    return %c0_i32, %arg0 : i32, i32
  }
}

</mosaic_0001>

<llo_original>
// kernel: spectral_norm_conv2d.2
$region0: #{spectral_norm_conv2d.2}
  #allocation0 [shape = 'u32[]', space=smem, size = 0x4, offset = 0x4, fixed_abs, tag = 'smem constant byte address 0x4 - core index']
  #allocation1 [shape = 'u32[144,128]{1,0:T(1,128)}', space=vmem, size = 0x12000, scoped, tag = 'internal scratch']
  %s0 = inlined_call_operand.vmem [shape: f32[8,36], index: 0, kind: input, shape index: {}]
  %s1 = inlined_call_operand.vmem [shape: f32[1,8], index: 1, kind: input, shape index: {}]
  %s2 = inlined_call_operand.hbm [shape: f32[1,8], index: 2, kind: output, shape index: {0}]
  %s3 = inlined_call_operand.hbm [shape: f32[1,1], index: 3, kind: output, shape index: {1}]
  %4 = xla_tuple %s2, %s3
  %s5 = sld [smem:[#allocation0]]
  $region26: #{spectral_norm_conv2d.2} parent=0
    _
  %s7 = ssub.s32 1, %s5
  %s8 = scalar_select 0, %s7, %s5
  $region1: #{spectral_norm_conv2d.2} parent=0
    #allocation2 [shape = 'u8[512]{0}', space=vmem, size = 0x400, scoped, tag = 'output window, operand 0, single buffered']
    #allocation3 [shape = 's32[1]{0}', space=sflag, size = 0x4, scoped, tag = 'scoped memory for spectral_norm_conv2d.2']
    #allocation4 [shape = 'u8[512]{0}', space=vmem, size = 0x400, scoped, tag = 'output window, operand 1, single buffered']
    #allocation5 [shape = 's32[1]{0}', space=sflag, size = 0x4, scoped, tag = 'scoped memory for spectral_norm_conv2d.2']
    %9 = vsyncpa [#allocation3], 0
    %10 = vsyncpa [#allocation5], 0
    // Predicated region
    $region2: #{spectral_norm_conv2d.2} parent=1 // pred_check
      _
    $region3: #{spectral_norm_conv2d.2} parent=1 // pred_check_branch
      %12 = sbr.rel (0) target = $region5
    $region4: #{spectral_norm_conv2d.2} parent=1 // pred_region
      _
    $region5: #{spectral_norm_conv2d.2} parent=1 // pred_fallthru
      _
    // Predicated region
    $region6: #{spectral_norm_conv2d.2} parent=1 // pred_check
      _
    $region7: #{spectral_norm_conv2d.2} parent=1 // pred_check_branch
      %14 = sbr.rel (0) target = $region9
    $region8: #{spectral_norm_conv2d.2} parent=1 // pred_region
      _
    $region9: #{spectral_norm_conv2d.2} parent=1 // pred_fallthru
      _
    %v15 = vld [vmem:[%s0] sm:$0xff]
    %v16 = vld [vmem:[%s1] sm:$0x1]
    %vm17 = vcmask 64512
    %v19 = vsel %vm17, %v16, 0
    %21 = vmatprep.subr.mxu0 0.0
    %22 = vmatpush1.msra.mxu0 0.0
    %23 = vmatprep.subr.mxu0 0.0
    %24 = vmatpush1.msra.mxu0 0.0
    %25 = vmatprep.subr.mxu0 0.0
    %26 = vmatpush1.msra.mxu0 0.0
    %27 = vmatprep.subr.mxu0 0.0
    %28 = vmatpush1.msra.mxu0 0.0
    %29 = vmatprep.subr.mxu0 0.0
    %30 = vmatpush1.msra.mxu0 0.0
    %31 = vmatprep.subr.mxu0 0.0
    %32 = vmatpush1.msra.mxu0 0.0
    %33 = vmatprep.subr.mxu0 0.0
    %34 = vmatpush1.msra.mxu0 0.0
    %35 = vmatprep.subr.mxu0 0.0
    %36 = vmatpush1.msra.mxu0 0.0
    %37 = vmatprep.subr.mxu0 0.0
    %38 = vmatpush1.msra.mxu0 0.0
    %39 = vmatprep.subr.mxu0 0.0
    %40 = vmatpush1.msra.mxu0 0.0
    %41 = vmatprep.subr.mxu0 0.0
    %42 = vmatpush1.msra.mxu0 0.0
    %43 = vmatprep.subr.mxu0 0.0
    %44 = vmatpush1.msra.mxu0 0.0
    %45 = vmatprep.subr.mxu0 0.0
    %46 = vmatpush1.msra.mxu0 0.0
    %47 = vmatprep.subr.mxu0 0.0
    %48 = vmatpush1.msra.mxu0 0.0
    %49 = vmatprep.subr.mxu0 0.0
    %50 = vmatpush1.msra.mxu0 0.0
    %51 = vmatprep.subr.mxu0 0.0
    %52 = vmatpush1.msra.mxu0 %v15
    %53 = vmatprep.subr.mxu0 0.0
    %54 = vmatpush2.msra.mxu0 0.0
    %55 = vmatprep.subr.mxu0 0.0
    %56 = vmatpush2.msra.mxu0 0.0
    %57 = vmatprep.subr.mxu0 0.0
    %58 = vmatpush2.msra.mxu0 0.0
    %59 = vmatprep.subr.mxu0 0.0
    %60 = vmatpush2.msra.mxu0 0.0
    %61 = vmatprep.subr.mxu0 0.0
    %62 = vmatpush2.msra.mxu0 0.0
    %63 = vmatprep.subr.mxu0 0.0
    %64 = vmatpush2.msra.mxu0 0.0
    %65 = vmatprep.subr.mxu0 0.0
    %66 = vmatpush2.msra.mxu0 0.0
    %67 = vmatprep.subr.mxu0 0.0
    %68 = vmatpush2.msra.mxu0 0.0
    %69 = vmatprep.subr.mxu0 0.0
    %70 = vmatpush2.msra.mxu0 0.0
    %71 = vmatprep.subr.mxu0 0.0
    %72 = vmatpush2.msra.mxu0 0.0
    %73 = vmatprep.subr.mxu0 0.0
    %74 = vmatpush2.msra.mxu0 0.0
    %75 = vmatprep.subr.mxu0 0.0
    %76 = vmatpush2.msra.mxu0 0.0
    %77 = vmatprep.subr.mxu0 0.0
    %78 = vmatpush2.msra.mxu0 0.0
    %79 = vmatprep.subr.mxu0 0.0
    %80 = vmatpush2.msra.mxu0 0.0
    %81 = vmatprep.subr.mxu0 0.0
    %82 = vmatpush2.msra.mxu0 0.0
    %83 = vmatprep.subr.mxu0 0.0
    %84 = vmatpush2.msra.mxu0 0.0
    %85 = vmatprep.mubr.f32.mxu0 0.0
    %86 = vmatmul.mubr.f32.gmra.mxu0 %v19
    %v87 = vpop.f32.mrf.mxu0
    %v88 = vadd.f32 0.0, %v87
    %v89 = vpop.f32.mrf.mxu0
    %90 = vdwg.mxu0
    %v91 = vmul.f32 %v88, %v88
    %vm92 = vcmask 286720
    %v93 = vsel %vm92, %v91, 0.0
    %94 = vadd.xlane.f32.xlu0 %v93
    %v95 = vpop.xlane.xlu0 %94
    %v96 = vrot.slane %v95, 4
    %v97 = vadd.f32 %v95, %v96
    %v98 = vrot.slane %v97, 2
    %v99 = vadd.f32 %v97, %v98
    %v100 = vrot.slane %v99, 1
    %v101 = vadd.f32 %v99, %v100
    %s102 = vtos %v101
    %v103 = vstv %s102
    %v104 = vrsqrt.pop %v103
    %v105 = vmul.f32 %v103, %v104
    %vm106 = vcmp.eq.f32.partialorder %v103, inf
    %v107 = vsel %vm106, %v103, %v105
    %vm108 = vcmp.eq.f32.partialorder %v103, 0.0
    %v109 = vand.u32 %v103, 2147483648
    %v110 = vsel %vm108, %v109, %v107
    %s111 = vtos %v110
    %s112 = sadd.f32 %s111, 1e-12
    %v113 = vstv %s112
    %v114 = vrcp.pop %v113
    %v115 = vmul.f32 %v88, %v114
    %vm116 = vcmask 293888
    %v118 = vsel %vm116, %v115, 0
    %v121 = vsel %vm116, %v15, 0
    %123 = vmatprep.subr.mxu0 0.0
    %124 = vmatpush1.xpose.msra.mxu0 0.0
    %125 = vmatprep.subr.mxu0 0.0
    %126 = vmatpush1.xpose.msra.mxu0 0.0
    %127 = vmatprep.subr.mxu0 0.0
    %128 = vmatpush1.xpose.msra.mxu0 0.0
    %129 = vmatprep.subr.mxu0 0.0
    %130 = vmatpush1.xpose.msra.mxu0 0.0
    %131 = vmatprep.subr.mxu0 0.0
    %132 = vmatpush1.xpose.msra.mxu0 0.0
    %133 = vmatprep.subr.mxu0 0.0
    %134 = vmatpush1.xpose.msra.mxu0 0.0
    %135 = vmatprep.subr.mxu0 0.0
    %136 = vmatpush1.xpose.msra.mxu0 0.0
    %137 = vmatprep.subr.mxu0 0.0
    %138 = vmatpush1.xpose.msra.mxu0 0.0
    %139 = vmatprep.subr.mxu0 0.0
    %140 = vmatpush1.xpose.msra.mxu0 0.0
    %141 = vmatprep.subr.mxu0 0.0
    %142 = vmatpush1.xpose.msra.mxu0 0.0
    %143 = vmatprep.subr.mxu0 0.0
    %144 = vmatpush1.xpose.msra.mxu0 0.0
    %145 = vmatprep.subr.mxu0 0.0
    %146 = vmatpush1.xpose.msra.mxu0 0.0
    %147 = vmatprep.subr.mxu0 0.0
    %148 = vmatpush1.xpose.msra.mxu0 0.0
    %149 = vmatprep.subr.mxu0 0.0
    %150 = vmatpush1.xpose.msra.mxu0 0.0
    %151 = vmatprep.subr.mxu0 0.0
    %152 = vmatpush1.xpose.msra.mxu0 0.0
    %153 = vmatprep.subr.mxu0 0.0
    %154 = vmatpush1.xpose.msra.mxu0 %v121
    %155 = vmatprep.subr.mxu0 0.0
    %156 = vmatpush2.xpose.msra.mxu0 0.0
    %157 = vmatprep.subr.mxu0 0.0
    %158 = vmatpush2.xpose.msra.mxu0 0.0
    %159 = vmatprep.subr.mxu0 0.0
    %160 = vmatpush2.xpose.msra.mxu0 0.0
    %161 = vmatprep.subr.mxu0 0.0
    %162 = vmatpush2.xpose.msra.mxu0 0.0
    %163 = vmatprep.subr.mxu0 0.0
    %164 = vmatpush2.xpose.msra.mxu0 0.0
    %165 = vmatprep.subr.mxu0 0.0
    %166 = vmatpush2.xpose.msra.mxu0 0.0
    %167 = vmatprep.subr.mxu0 0.0
    %168 = vmatpush2.xpose.msra.mxu0 0.0
    %169 = vmatprep.subr.mxu0 0.0
    %170 = vmatpush2.xpose.msra.mxu0 0.0
    %171 = vmatprep.subr.mxu0 0.0
    %172 = vmatpush2.xpose.msra.mxu0 0.0
    %173 = vmatprep.subr.mxu0 0.0
    %174 = vmatpush2.xpose.msra.mxu0 0.0
    %175 = vmatprep.subr.mxu0 0.0
    %176 = vmatpush2.xpose.msra.mxu0 0.0
    %177 = vmatprep.subr.mxu0 0.0
    %178 = vmatpush2.xpose.msra.mxu0 0.0
    %179 = vmatprep.subr.mxu0 0.0
    %180 = vmatpush2.xpose.msra.mxu0 0.0
    %181 = vmatprep.subr.mxu0 0.0
    %182 = vmatpush2.xpose.msra.mxu0 0.0
    %183 = vmatprep.subr.mxu0 0.0
    %184 = vmatpush2.xpose.msra.mxu0 0.0
    %185 = vmatprep.subr.mxu0 0.0
    %186 = vmatpush2.xpose.msra.mxu0 0.0
    %187 = vmatprep.mubr.f32.mxu0 0.0
    %188 = vmatmul.mubr.f32.gmra.mxu0 %v118
    %v189 = vpop.f32.mrf.mxu0
    %v190 = vadd.f32 0.0, %v189
    %v191 = vpop.f32.mrf.mxu0
    %192 = vdwg.mxu0
    %v193 = vmul.f32 %v190, %v190
    %vm194 = vcmask 57344
    %v195 = vsel %vm194, %v193, 0.0
    %196 = vadd.xlane.f32.xlu0 %v195
    %v197 = vpop.xlane.xlu0 %196
    %v198 = vrot.slane %v197, 4
    %v199 = vadd.f32 %v197, %v198
    %v200 = vrot.slane %v199, 2
    %v201 = vadd.f32 %v199, %v200
    %v202 = vrot.slane %v201, 1
    %v203 = vadd.f32 %v201, %v202
    %s204 = vtos %v203
    %v205 = vstv %s204
    %v206 = vrsqrt.pop %v205
    %v207 = vmul.f32 %v205, %v206
    %vm208 = vcmp.eq.f32.partialorder %v205, inf
    %v209 = vsel %vm208, %v205, %v207
    %vm210 = vcmp.eq.f32.partialorder %v205, 0.0
    %v211 = vand.u32 %v205, 2147483648
    %v212 = vsel %vm210, %v211, %v209
    %s213 = vtos %v212
    %s214 = sadd.f32 %s213, 1e-12
    %v215 = vstv %s214
    %v216 = vrcp.pop %v215
    %v217 = vmul.f32 %v190, %v216
    %v218 = vmul.f32 %v217, %v190
    %v219 = vsel %vm194, %v218, 0.0
    %220 = vadd.xlane.f32.xlu0 %v219
    %v221 = vpop.xlane.xlu0 %220
    %v222 = vrot.slane %v221, 4
    %v223 = vadd.f32 %v221, %v222
    %v224 = vrot.slane %v223, 2
    %v225 = vadd.f32 %v223, %v224
    %v226 = vrot.slane %v225, 1
    %v227 = vadd.f32 %v225, %v226
    %s228 = vtos %v227
    %v229 = vstv %s228
    %230 = vst.msk [vmem:[#allocation2] sm:$0x1] %vm194, %v217
    %v231 = vrcp.pop %v229
    %v232 = vmul.f32 1.0, %v231
    %vm233 = vcmask 0
    %234 = vst.msk [vmem:[#allocation4] sm:$0x1] %vm233, %v232
    // Predicated region
    $region10: #{spectral_norm_conv2d.2} parent=1 // pred_check
      _
    $region11: #{spectral_norm_conv2d.2} parent=1 // pred_check_branch
      %236 = sbr.rel (0) target = $region13
    $region12: #{spectral_norm_conv2d.2} parent=1 // pred_region
      %s238 = ssub.s32 16, 16
      %239 = vsyncadd [#allocation3], %s238
      %s241 = sshll.u32 [#allocation2], 4
      %s242 = int_to_ptr.vmem [resolvable:$true] %s241
      %244 = dma.vmem_to_hbm [thread:$0]  %s242, 16, %s2, [#allocation3]
    $region13: #{spectral_norm_conv2d.2} parent=1 // pred_fallthru
      _
    // Predicated region
    $region14: #{spectral_norm_conv2d.2} parent=1 // pred_check
      _
    $region15: #{spectral_norm_conv2d.2} parent=1 // pred_check_branch
      %246 = sbr.rel (0) target = $region17
    $region16: #{spectral_norm_conv2d.2} parent=1 // pred_region
      %s248 = ssub.s32 16, 16
      %249 = vsyncadd [#allocation5], %s248
      %s251 = sshll.u32 [#allocation4], 4
      %s252 = int_to_ptr.vmem [resolvable:$true] %s251
      %254 = dma.vmem_to_hbm [thread:$0]  %s252, 16, %s3, [#allocation5]
    $region17: #{spectral_norm_conv2d.2} parent=1 // pred_fallthru
      _
    // Predicated region
    $region18: #{spectral_norm_conv2d.2} parent=1 // pred_check
      _
    $region19: #{spectral_norm_conv2d.2} parent=1 // pred_check_branch
      %256 = sbr.rel (0) target = $region21
    $region20: #{spectral_norm_conv2d.2} parent=1 // pred_region
      %257 = dma.done [#allocation3], 16
    $region21: #{spectral_norm_conv2d.2} parent=1 // pred_fallthru
      _
    // Predicated region
    $region22: #{spectral_norm_conv2d.2} parent=1 // pred_check
      _
    $region23: #{spectral_norm_conv2d.2} parent=1 // pred_check_branch
      %259 = sbr.rel (0) target = $region25
    $region24: #{spectral_norm_conv2d.2} parent=1 // pred_region
      %260 = dma.done [#allocation5], 16
    $region25: #{spectral_norm_conv2d.2} parent=1 // pred_fallthru
      _
    %261 = vsyncpa [#allocation3], 1
    %262 = vsyncpa [#allocation5], 1

// kernel: spectral_norm_conv2d.3
$region0: #{spectral_norm_conv2d.3}
  #allocation0 [shape = 'u32[]', space=smem, size = 0x4, offset = 0x4, fixed_abs, tag = 'smem constant byte address 0x4 - core index']
  #allocation1 [shape = 'u32[144,128]{1,0:T(1,128)}', space=vmem, size = 0x12000, scoped, tag = 'internal scratch']
  #allocation2 [shape = 'f32[4,512]{1,0:T(4,128)}', space=vmem, size = 0x2000, scoped, tag = 'scratch operand']
  #allocation3 [shape = 'f32[36,384]{1,0:T(8,128)}', space=vmem, size = 0xf000, scoped, tag = 'scratch operand']
  #allocation4 [shape = 'f32[1,1]{1,0:T(1,128)S(6)}', space=smem, size = 0x200, scoped, tag = 'scoped memory for spectral_norm_conv2d.3']
  %s0 = inlined_call_operand.vmem [shape: f32[4,896], index: 0, kind: input, shape index: {}, may-alias: {0,1}]
  %s1 = inlined_call_operand.vmem [shape: f32[4,896], index: 1, kind: input, shape index: {}, may-alias: {0,1}]
  %s2 = inlined_call_operand.vmem [shape: f32[8,36], index: 2, kind: input, shape index: {}]
  %s3 = inlined_call_operand.vmem [shape: f32[8,1], index: 3, kind: input, shape index: {}]
  %s4 = inlined_call_operand.<no memory space> [shape: f32[1,1], index: 4, kind: input, shape index: {}]
  %s5 = inlined_call_operand.vmem [shape: f32[8,768], index: 5, kind: output, shape index: {}]
  %s6 = sld [smem:[#allocation0]]
  $region53: #{spectral_norm_conv2d.3} parent=0
    _
  %s8 = ssub.s32 1, %s6
  %s9 = scalar_select 0, %s8, %s6
  %10 = sst [smem:[#allocation4]] %s4
  loop: start=0, step=1, limit=4
  $region2: #{spectral_norm_conv2d.3} parent=0 // loop_pre_header
    _
  $region3: #{spectral_norm_conv2d.3} parent=0 // loop_header
    %s12 = sphi 0, %s16
    %p13 = scmp.ge.s32.totalorder %s12, 4
    %s22 = sphi 0, %s24
    %s25 = sphi 0, %s22
    %s26 = sphi 0, %s25
    %s42 = sphi 0, %s26
    %s52 = sphi 0, %s54
    %s55 = sphi 0, %s52
    %s56 = sphi 0, %s55
    %s72 = sphi 0, %s56
    %s76 = sphi 0, %s76
    %s78 = sphi 0, %s76
    %s79 = sphi 0, %s78
    %s93 = sphi 0, %s79
    %s97 = sphi 0, %s97
    %s99 = sphi 0, %s97
    %s100 = sphi 0, %s99
    %s114 = sphi 0, %s100
    %s118 = sphi 0, %s118
    %s120 = sphi 0, %s118
    %s121 = sphi 0, %s120
    %s135 = sphi 0, %s121
    %s141 = sphi 0, %s143
    %s144 = sphi 0, %s141
    %s145 = sphi 0, %s144
    %s161 = sphi 0, %s145
  $region4: #{spectral_norm_conv2d.3} parent=0 // loop_header_branch
    %15 = sbr.rel (%p13) target = $region8
  $region5: #{spectral_norm_conv2d.3} parent=0 // loop_body
    %s17 = ssub.s32 %s12, 1
    %s18 = ssub.s32 %s12, 2
    %s19 = sadd.s32 %s12, 1
    %s20 = ssub.s32 %s12, %s19
    %p21 = scmp.eq.s32.totalorder %s20, 0
    %s23 = sadd.s32 %s22, 1
    %s24 = scalar_select %p21, %s22, %s23
    %p27 = pneg %p21
    %p28 = scmp.eq.s32.totalorder %s12, 1
    %p29 = por %p27, %p28
    %p30 = scmp.ne.s32.totalorder %s22, %s25
    %p31 = scmp.eq.s32.totalorder %s12, 0
    %p32 = por %p30, %p31
    %p33 = scmp.ne.s32.totalorder %s22, %s25
    %p34 = scmp.eq.s32.totalorder %s17, 1
    %p35 = por %p33, %p34
    %p36 = scmp.ne.s32.totalorder %s25, %s26
    %p37 = scmp.eq.s32.totalorder %s17, 0
    %p38 = por %p36, %p37
    %p39 = scmp.ne.s32.totalorder %s25, %s26
    %p40 = scmp.eq.s32.totalorder %s18, 1
    %p41 = por %p39, %p40
    %p43 = scmp.ne.s32.totalorder %s26, %s42
    %p44 = scmp.eq.s32.totalorder %s18, 0
    %p45 = por %p43, %p44
    %s46 = sadd.s32 %s12, 1
    %s47 = smul.u32 %s46, 3
    %s48 = sadd.s32 %s19, 1
    %s49 = smul.u32 %s48, 3
    %s50 = ssub.s32 %s47, %s49
    %p51 = scmp.eq.s32.totalorder %s50, 0
    %s53 = sadd.s32 %s52, 1
    %s54 = scalar_select %p51, %s52, %s53
    %p57 = pneg %p51
    %p58 = scmp.eq.s32.totalorder %s12, 1
    %p59 = por %p57, %p58
    %p60 = scmp.ne.s32.totalorder %s52, %s55
    %p61 = scmp.eq.s32.totalorder %s12, 0
    %p62 = por %p60, %p61
    %p63 = scmp.ne.s32.totalorder %s52, %s55
    %p64 = scmp.eq.s32.totalorder %s17, 1
    %p65 = por %p63, %p64
    %p66 = scmp.ne.s32.totalorder %s55, %s56
    %p67 = scmp.eq.s32.totalorder %s17, 0
    %p68 = por %p66, %p67
    %p69 = scmp.ne.s32.totalorder %s55, %s56
    %p70 = scmp.eq.s32.totalorder %s18, 1
    %p71 = por %p69, %p70
    %p73 = scmp.ne.s32.totalorder %s56, %s72
    %p74 = scmp.eq.s32.totalorder %s18, 0
    %p75 = por %p73, %p74
    %s77 = sadd.s32 %s76, 1
    %p80 = scmp.eq.s32.totalorder %s12, 1
    %p81 = scmp.ne.s32.totalorder %s76, %s78
    %p82 = scmp.eq.s32.totalorder %s12, 0
    %p83 = por %p81, %p82
    %p84 = scmp.ne.s32.totalorder %s76, %s78
    %p85 = scmp.eq.s32.totalorder %s17, 1
    %p86 = por %p84, %p85
    %p87 = scmp.ne.s32.totalorder %s78, %s79
    %p88 = scmp.eq.s32.totalorder %s17, 0
    %p89 = por %p87, %p88
    %p90 = scmp.ne.s32.totalorder %s78, %s79
    %p91 = scmp.eq.s32.totalorder %s18, 1
    %p92 = por %p90, %p91
    %p94 = scmp.ne.s32.totalorder %s79, %s93
    %p95 = scmp.eq.s32.totalorder %s18, 0
    %p96 = por %p94, %p95
    %s98 = sadd.s32 %s97, 1
    %p101 = scmp.eq.s32.totalorder %s12, 1
    %p102 = scmp.ne.s32.totalorder %s97, %s99
    %p103 = scmp.eq.s32.totalorder %s12, 0
    %p104 = por %p102, %p103
    %p105 = scmp.ne.s32.totalorder %s97, %s99
    %p106 = scmp.eq.s32.totalorder %s17, 1
    %p107 = por %p105, %p106
    %p108 = scmp.ne.s32.totalorder %s99, %s100
    %p109 = scmp.eq.s32.totalorder %s17, 0
    %p110 = por %p108, %p109
    %p111 = scmp.ne.s32.totalorder %s99, %s100
    %p112 = scmp.eq.s32.totalorder %s18, 1
    %p113 = por %p111, %p112
    %p115 = scmp.ne.s32.totalorder %s100, %s114
    %p116 = scmp.eq.s32.totalorder %s18, 0
    %p117 = por %p115, %p116
    %s119 = sadd.s32 %s118, 1
    %p122 = scmp.eq.s32.totalorder %s12, 1
    %p123 = scmp.ne.s32.totalorder %s118, %s120
    %p124 = scmp.eq.s32.totalorder %s12, 0
    %p125 = por %p123, %p124
    %p126 = scmp.ne.s32.totalorder %s118, %s120
    %p127 = scmp.eq.s32.totalorder %s17, 1
    %p128 = por %p126, %p127
    %p129 = scmp.ne.s32.totalorder %s120, %s121
    %p130 = scmp.eq.s32.totalorder %s17, 0
    %p131 = por %p129, %p130
    %p132 = scmp.ne.s32.totalorder %s120, %s121
    %p133 = scmp.eq.s32.totalorder %s18, 1
    %p134 = por %p132, %p133
    %p136 = scmp.ne.s32.totalorder %s121, %s135
    %p137 = scmp.eq.s32.totalorder %s18, 0
    %p138 = por %p136, %p137
    %s139 = ssub.s32 %s12, %s19
    %p140 = scmp.eq.s32.totalorder %s139, 0
    %s142 = sadd.s32 %s141, 1
    %s143 = scalar_select %p140, %s141, %s142
    %p146 = pneg %p140
    %p147 = scmp.eq.s32.totalorder %s12, 1
    %p148 = por %p146, %p147
    %p149 = scmp.ne.s32.totalorder %s141, %s144
    %p150 = scmp.eq.s32.totalorder %s12, 0
    %p151 = por %p149, %p150
    %p152 = scmp.ne.s32.totalorder %s141, %s144
    %p153 = scmp.eq.s32.totalorder %s17, 1
    %p154 = por %p152, %p153
    %p155 = scmp.ne.s32.totalorder %s144, %s145
    %p156 = scmp.eq.s32.totalorder %s17, 0
    %p157 = por %p155, %p156
    %p158 = scmp.ne.s32.totalorder %s144, %s145
    %p159 = scmp.eq.s32.totalorder %s18, 1
    %p160 = por %p158, %p159
    %p162 = scmp.ne.s32.totalorder %s145, %s161
    %p163 = scmp.eq.s32.totalorder %s18, 0
    %p164 = por %p162, %p163
    %p165 = scmp.le.s32.totalorder 1, %s12
    %p166 = scmp.lt.s32.totalorder %s12, 3
    %p167 = pnand %p165, %p166
    %p168 = pneg %p167
    // Predicated region
    $region9: #{spectral_norm_conv2d.3} parent=5 // pred_check
      _
    $region10: #{spectral_norm_conv2d.3} parent=5 // pred_check_branch
      %170 = sbr.rel (%p167) target = $region12
    $region11: #{spectral_norm_conv2d.3} parent=5 // pred_region
      %s171 = ssub.s32 %s12, 1
      // Predicated region
      $region13: #{spectral_norm_conv2d.3} parent=11 // pred_check
        %p172 = pneg %p89
      $region14: #{spectral_norm_conv2d.3} parent=11 // pred_check_branch
        %174 = sbr.rel (%p172) target = $region16
      $region15: #{spectral_norm_conv2d.3} parent=11 // pred_region
        _
      $region16: #{spectral_norm_conv2d.3} parent=11 // pred_fallthru
        _
      // Predicated region
      $region17: #{spectral_norm_conv2d.3} parent=11 // pred_check
        %p175 = pneg %p110
      $region18: #{spectral_norm_conv2d.3} parent=11 // pred_check_branch
        %177 = sbr.rel (%p175) target = $region20
      $region19: #{spectral_norm_conv2d.3} parent=11 // pred_region
        _
      $region20: #{spectral_norm_conv2d.3} parent=11 // pred_fallthru
        _
      // Predicated region
      $region21: #{spectral_norm_conv2d.3} parent=11 // pred_check
        %p178 = pneg %p131
      $region22: #{spectral_norm_conv2d.3} parent=11 // pred_check_branch
        %180 = sbr.rel (%p178) target = $region24
      $region23: #{spectral_norm_conv2d.3} parent=11 // pred_region
        _
      $region24: #{spectral_norm_conv2d.3} parent=11 // pred_fallthru
        _
    $region12: #{spectral_norm_conv2d.3} parent=5 // pred_fallthru
      _
    %p181 = scmp.lt.s32.totalorder %s12, 2
    // Predicated region
    $region25: #{spectral_norm_conv2d.3} parent=5 // pred_check
      %p182 = pneg %p181
    $region26: #{spectral_norm_conv2d.3} parent=5 // pred_check_branch
      %184 = sbr.rel (%p182) target = $region28
    $region27: #{spectral_norm_conv2d.3} parent=5 // pred_region
      // Predicated region
      $region29: #{spectral_norm_conv2d.3} parent=27 // pred_check
        %p185 = pneg %p32
      $region30: #{spectral_norm_conv2d.3} parent=27 // pred_check_branch
        %187 = sbr.rel (%p185) target = $region32
      $region31: #{spectral_norm_conv2d.3} parent=27 // pred_region
        %s188 = smul.u32 3, %s12
        %s189 = ssub.s32 7, %s188
        %p190 = scmp.lt.s32.totalorder %s189, 3
        %s191 = scalar_select %p190, %s189, 3
        %s192 = smul.u32 64, %s191
        %p193 = scmp.lt.s32.totalorder %s188, 6
        %s194 = scalar_select %p193, %s188, 6
        %s195 = smul.addr %s194, 4
        %s196 = scalar_lea.vmem %s0, %s195
        %s197 = smul.u32 3, %s12
        %s198 = ssub.s32 7, %s197
        %p199 = scmp.lt.s32.totalorder %s198, 3
        %s200 = scalar_select %p199, %s198, 3
        %s201 = smul.u32 64, %s200
      $region32: #{spectral_norm_conv2d.3} parent=27 // pred_fallthru
        _
      // Predicated region
      $region33: #{spectral_norm_conv2d.3} parent=27 // pred_check
        %p202 = pneg %p62
      $region34: #{spectral_norm_conv2d.3} parent=27 // pred_check_branch
        %204 = sbr.rel (%p202) target = $region36
      $region35: #{spectral_norm_conv2d.3} parent=27 // pred_region
        %s205 = sadd.s32 %s12, 1
        %s206 = smul.u32 %s205, 3
        %p207 = scmp.lt.s32.totalorder %s206, 6
        %s208 = scalar_select %p207, %s206, 6
        %s209 = smul.addr %s208, 4
        %s210 = scalar_lea.vmem %s1, %s209
        %s211 = sadd.s32 %s12, 1
        %s212 = smul.u32 %s211, 3
      $region36: #{spectral_norm_conv2d.3} parent=27 // pred_fallthru
        _
    $region28: #{spectral_norm_conv2d.3} parent=5 // pred_fallthru
      _
    %p213 = scmp.le.s32.totalorder 1, %s12
    %p214 = scmp.lt.s32.totalorder %s12, 3
    %p215 = pnand %p213, %p214
    %p216 = pneg %p215
    // Predicated region
    $region37: #{spectral_norm_conv2d.3} parent=5 // pred_check
      _
    $region38: #{spectral_norm_conv2d.3} parent=5 // pred_check_branch
      %218 = sbr.rel (%p215) target = $region40
    $region39: #{spectral_norm_conv2d.3} parent=5 // pred_region
      %s219 = ssub.s32 %s12, 1
      %s220 = smul.u32 3, %s17
      %s221 = ssub.s32 7, %s220
      %p222 = scmp.lt.s32.totalorder %s221, 3
      %s223 = scalar_select %p222, %s221, 3
      %s224 = smul.u32 64, %s223
      %p225 = scmp.lt.s32.totalorder %s220, 6
      %s226 = scalar_select %p225, %s220, 6
      %s227 = smul.addr %s226, 4
      %s228 = scalar_lea.vmem %s0, %s227
      %p229 = pneg %p38
      %p230 = pneg %p35
      %s231 = sadd.s32 %s17, 1
      %s232 = smul.u32 %s231, 3
      %p233 = scmp.lt.s32.totalorder %s232, 6
      %s234 = scalar_select %p233, %s232, 6
      %s235 = smul.addr %s234, 4
      %s236 = scalar_lea.vmem %s1, %s235
      %p237 = pneg %p68
      %p238 = pneg %p65
      %p239 = pneg %p89
      %p240 = pneg %p86
      %p241 = pneg %p110
      %p242 = pneg %p107
      %p243 = pneg %p131
      %p244 = pneg %p128
      %p245 = pneg %p157
      %p246 = pneg %p154
      %s247 = smul.u32 3, %s17
      %p248 = scmp.lt.s32.totalorder %s247, 5
      %s249 = scalar_select %p248, %s247, 5
      %s250 = smul.addr %s249, 8
      %s251 = scalar_lea.vmem %s5, %s250
      %s252 = smul.u32 3, %s17
      %s253 = ssub.s32 7, %s252
      %p254 = scmp.lt.s32.totalorder %s253, 3
      %s255 = scalar_select %p254, %s253, 3
      %s256 = smul.u32 64, %s255
      %p257 = scmp.lt.s32.totalorder %s252, 6
      %s258 = scalar_select %p257, %s252, 6
      %s259 = smul.addr %s258, 4
      %s260 = scalar_lea.vmem %s0, %s259
      %s261 = smul.u32 3, %s17
      %s262 = ssub.s32 7, %s261
      %p263 = scmp.lt.s32.totalorder %s262, 3
      %s264 = scalar_select %p263, %s262, 3
      %s265 = smul.u32 64, %s264
      %s266 = sadd.s32 %s17, 1
      %s267 = smul.u32 %s266, 3
      %p268 = scmp.lt.s32.totalorder %s267, 6
      %s269 = scalar_select %p268, %s267, 6
      %s270 = smul.addr %s269, 4
      %s271 = scalar_lea.vmem %s1, %s270
      %s272 = sadd.s32 %s17, 1
      %s273 = smul.u32 %s272, 3
      %s274 = smul.u32 3, %s17
      %p275 = scmp.lt.s32.totalorder %s274, 5
      %s276 = scalar_select %p275, %s274, 5
      %s277 = smul.addr %s276, 8
      %s278 = scalar_lea.vmem %s5, %s277
      %s279 = smul.u32 3, %s17
      %v280 = vld [vmem:[%s260] sm:$0xff]
      %v281 = vld [vmem:[%s260 + $0x8] sm:$0xf]
      %282 = vst [vmem:[#allocation2] sm:$0xff] %v280
      %283 = vst [vmem:[#allocation2 + $0x8] sm:$0xf] %v281
      %v284 = vld [vmem:[%s271] sm:$0xf]
      %285 = vst [vmem:[#allocation2 + $0xc] sm:$0xf] %v284
      %v286 = vld [vmem:[#allocation2] sm:$0xff]
      %v287 = vld [vmem:[#allocation2 + $0x8] sm:$0xf]
      %v289 = vcombine.high %v286, %v286
      %291 = vst [vmem:[#allocation3] sm:$0xf] %v286
      %292 = vst [vmem:[#allocation3 + $0x8] sm:$0xf] %v289
      %293 = vst [vmem:[#allocation3 + $0x10] sm:$0xf] %v287
      %v294 = vld [vmem:[#allocation2] sm:$0xff]
      %v295 = vld [vmem:[#allocation2 + $0x8] sm:$0xff]
      %v298 = vcombine.low %v294, %v294
      %v299 = vcombine.low %v295, %v295
      %300 = vrot.lane.b32.xlu0 %v298, 127
      %v301 = vpop.permute.xlu0 %300
      %302 = vrot.lane.b32.xlu0 %v294, 127
      %v303 = vpop.permute.xlu0 %302
      %304 = vrot.lane.b32.xlu0 %v299, 127
      %v305 = vpop.permute.xlu0 %304
      %306 = vrot.lane.b32.xlu0 %v295, 127
      %v307 = vpop.permute.xlu0 %306
      %vm308 = vcmask 1039360
      %v309 = vsel %vm308, %v301, %v303
      %v310 = vsel %vm308, %v303, %v305
      %v311 = vsel %vm308, %v305, %v307
      %315 = vst [vmem:[#allocation3] sm:$0xf0] %v309
      %316 = vst [vmem:[#allocation3 + $0x8] sm:$0xf0] %v310
      %317 = vst [vmem:[#allocation3 + $0x10] sm:$0xf0] %v311
      %v318 = vld [vmem:[#allocation2] sm:$0xff]
      %v319 = vld [vmem:[#allocation2 + $0x8] sm:$0xff]
      %v322 = vcombine.high %v318, %v318
      %v323 = vcombine.high %v319, %v319
      %324 = vrot.lane.b32.xlu0 %v318, 126
      %v325 = vpop.permute.xlu0 %324
      %326 = vrot.lane.b32.xlu0 %v322, 126
      %v327 = vpop.permute.xlu0 %326
      %328 = vrot.lane.b32.xlu0 %v319, 126
      %v329 = vpop.permute.xlu0 %328
      %330 = vrot.lane.b32.xlu0 %v323, 126
      %v331 = vpop.permute.xlu0 %330
      %vm332 = vcmask 1031168
      %v333 = vsel %vm332, %v325, %v327
      %v334 = vsel %vm332, %v327, %v329
      %v335 = vsel %vm332, %v329, %v331
      %339 = vst [vmem:[#allocation3 + $0x18] sm:$0xf] %v333
      %340 = vst [vmem:[#allocation3 + $0x20] sm:$0xf] %v334
      %341 = vst [vmem:[#allocation3 + $0x28] sm:$0xf] %v335
      %v342 = vld [vmem:[#allocation2] sm:$0xff]
      %v343 = vld [vmem:[#allocation2 + $0x8] sm:$0xff]
      %v346 = vcombine.low %v342, %v342
      %v347 = vcombine.low %v343, %v343
      %348 = vrot.lane.b32.xlu0 %v346, 110
      %v349 = vpop.permute.xlu0 %348
      %350 = vrot.lane.b32.xlu0 %v342, 110
      %v351 = vpop.permute.xlu0 %350
      %352 = vrot.lane.b32.xlu0 %v347, 110
      %v353 = vpop.permute.xlu0 %352
      %354 = vrot.lane.b32.xlu0 %v343, 110
      %v355 = vpop.permute.xlu0 %354
      %vm356 = vcmask 900096
      %v357 = vsel %vm356, %v349, %v351
      %v358 = vsel %vm356, %v351, %v353
      %v359 = vsel %vm356, %v353, %v355
      %363 = vst [vmem:[#allocation3 + $0x18] sm:$0xf0] %v357
      %364 = vst [vmem:[#allocation3 + $0x20] sm:$0xf0] %v358
      %365 = vst [vmem:[#allocation3 + $0x28] sm:$0xf0] %v359
      %v366 = vld [vmem:[#allocation2] sm:$0xff]
      %v367 = vld [vmem:[#allocation2 + $0x8] sm:$0xff]
      %v370 = vcombine.high %v366, %v366
      %v371 = vcombine.high %v367, %v367
      %372 = vrot.lane.b32.xlu0 %v366, 109
      %v373 = vpop.permute.xlu0 %372
      %374 = vrot.lane.b32.xlu0 %v370, 109
      %v375 = vpop.permute.xlu0 %374
      %376 = vrot.lane.b32.xlu0 %v367, 109
      %v377 = vpop.permute.xlu0 %376
      %378 = vrot.lane.b32.xlu0 %v371, 109
      %v379 = vpop.permute.xlu0 %378
      %vm380 = vcmask 891904
      %v381 = vsel %vm380, %v373, %v375
      %v382 = vsel %vm380, %v375, %v377
      %v383 = vsel %vm380, %v377, %v379
      %387 = vst [vmem:[#allocation3 + $0x30] sm:$0xf] %v381
      %388 = vst [vmem:[#allocation3 + $0x38] sm:$0xf] %v382
      %389 = vst [vmem:[#allocation3 + $0x40] sm:$0xf] %v383
      %v390 = vld [vmem:[#allocation2] sm:$0xff]
      %v391 = vld [vmem:[#allocation2 + $0x8] sm:$0xff]
      %v394 = vcombine.low %v390, %v390
      %v395 = vcombine.low %v391, %v391
      %396 = vrot.lane.b32.xlu0 %v394, 108
      %v397 = vpop.permute.xlu0 %396
      %398 = vrot.lane.b32.xlu0 %v390, 108
      %v399 = vpop.permute.xlu0 %398
      %400 = vrot.lane.b32.xlu0 %v395, 108
      %v401 = vpop.permute.xlu0 %400
      %402 = vrot.lane.b32.xlu0 %v391, 108
      %v403 = vpop.permute.xlu0 %402
      %vm404 = vcmask 883712
      %v405 = vsel %vm404, %v397, %v399
      %v406 = vsel %vm404, %v399, %v401
      %v407 = vsel %vm404, %v401, %v403
      %411 = vst [vmem:[#allocation3 + $0x30] sm:$0xf0] %v405
      %412 = vst [vmem:[#allocation3 + $0x38] sm:$0xf0] %v406
      %413 = vst [vmem:[#allocation3 + $0x40] sm:$0xf0] %v407
      %v414 = vld [vmem:[#allocation2] sm:$0xff]
      %v415 = vld [vmem:[#allocation2 + $0x8] sm:$0xff]
      %v418 = vcombine.high %v414, %v414
      %v419 = vcombine.high %v415, %v415
      %420 = vrot.lane.b32.xlu0 %v414, 92
      %v421 = vpop.permute.xlu0 %420
      %422 = vrot.lane.b32.xlu0 %v418, 92
      %v423 = vpop.permute.xlu0 %422
      %424 = vrot.lane.b32.xlu0 %v415, 92
      %v425 = vpop.permute.xlu0 %424
      %426 = vrot.lane.b32.xlu0 %v419, 92
      %v427 = vpop.permute.xlu0 %426
      %vm428 = vcmask 752640
      %v429 = vsel %vm428, %v421, %v423
      %v430 = vsel %vm428, %v423, %v425
      %v431 = vsel %vm428, %v425, %v427
      %435 = vst [vmem:[#allocation3 + $0x48] sm:$0xf] %v429
      %436 = vst [vmem:[#allocation3 + $0x50] sm:$0xf] %v430
      %437 = vst [vmem:[#allocation3 + $0x58] sm:$0xf] %v431
      %v438 = vld [vmem:[#allocation2] sm:$0xff]
      %v439 = vld [vmem:[#allocation2 + $0x8] sm:$0xff]
      %v442 = vcombine.low %v438, %v438
      %v443 = vcombine.low %v439, %v439
      %444 = vrot.lane.b32.xlu0 %v442, 91
      %v445 = vpop.permute.xlu0 %444
      %446 = vrot.lane.b32.xlu0 %v438, 91
      %v447 = vpop.permute.xlu0 %446
      %448 = vrot.lane.b32.xlu0 %v443, 91
      %v449 = vpop.permute.xlu0 %448
      %450 = vrot.lane.b32.xlu0 %v439, 91
      %v451 = vpop.permute.xlu0 %450
      %vm452 = vcmask 744448
      %v453 = vsel %vm452, %v445, %v447
      %v454 = vsel %vm452, %v447, %v449
      %v455 = vsel %vm452, %v449, %v451
      %459 = vst [vmem:[#allocation3 + $0x48] sm:$0xf0] %v453
      %460 = vst [vmem:[#allocation3 + $0x50] sm:$0xf0] %v454
      %461 = vst [vmem:[#allocation3 + $0x58] sm:$0xf0] %v455
      %v462 = vld [vmem:[#allocation2] sm:$0xff]
      %v463 = vld [vmem:[#allocation2 + $0x8] sm:$0xff]
      %v466 = vcombine.high %v462, %v462
      %v467 = vcombine.high %v463, %v463
      %468 = vrot.lane.b32.xlu0 %v462, 90
      %v469 = vpop.permute.xlu0 %468
      %470 = vrot.lane.b32.xlu0 %v466, 90
      %v471 = vpop.permute.xlu0 %470
      %472 = vrot.lane.b32.xlu0 %v463, 90
      %v473 = vpop.permute.xlu0 %472
      %474 = vrot.lane.b32.xlu0 %v467, 90
      %v475 = vpop.permute.xlu0 %474
      %vm476 = vcmask 736256
      %v477 = vsel %vm476, %v469, %v471
      %v478 = vsel %vm476, %v471, %v473
      %v479 = vsel %vm476, %v473, %v475
      %483 = vst [vmem:[#allocation3 + $0x60] sm:$0xf] %v477
      %484 = vst [vmem:[#allocation3 + $0x68] sm:$0xf] %v478
      %485 = vst [vmem:[#allocation3 + $0x70] sm:$0xf] %v479
      %v486 = vld [vmem:[%s2] sm:$0xff]
      %v487 = vld [vmem:[#allocation3] sm:$0xff]
      %v488 = vld [vmem:[#allocation3 + $0x8] sm:$0xff]
      %v489 = vld [vmem:[#allocation3 + $0x10] sm:$0xff]
      %v490 = vld [vmem:[#allocation3 + $0x18] sm:$0xff]
      %v491 = vld [vmem:[#allocation3 + $0x20] sm:$0xff]
      %v492 = vld [vmem:[#allocation3 + $0x28] sm:$0xff]
      %v493 = vld [vmem:[#allocation3 + $0x30] sm:$0xff]
      %v494 = vld [vmem:[#allocation3 + $0x38] sm:$0xff]
      %v495 = vld [vmem:[#allocation3 + $0x40] sm:$0xff]
      %v496 = vld [vmem:[#allocation3 + $0x48] sm:$0xff]
      %v497 = vld [vmem:[#allocation3 + $0x50] sm:$0xff]
      %v498 = vld [vmem:[#allocation3 + $0x58] sm:$0xff]
      %v499 = vld [vmem:[#allocation3 + $0x60] sm:$0xf]
      %v500 = vld [vmem:[#allocation3 + $0x68] sm:$0xf]
      %v501 = vld [vmem:[#allocation3 + $0x70] sm:$0xf]
      %vm502 = vcmask 293888
      %v504 = vsel %vm502, %v486, 0
      %vm506 = vcmask 1043456
      %v508 = vsel %vm506, %v499, 0
      %v511 = vsel %vm506, %v500, 0
      %v514 = vsel %vm506, %v501, 0
      %516 = vmatprep.subr.mxu0 0.0
      %517 = vmatpush1.msra.mxu0 0.0
      %518 = vmatprep.subr.mxu0 0.0
      %519 = vmatpush1.msra.mxu0 0.0
      %520 = vmatprep.subr.mxu0 0.0
      %521 = vmatpush1.msra.mxu0 0.0
      %522 = vmatprep.subr.mxu0 0.0
      %523 = vmatpush1.msra.mxu0 0.0
      %524 = vmatprep.subr.mxu0 0.0
      %525 = vmatpush1.msra.mxu0 0.0
      %526 = vmatprep.subr.mxu0 0.0
      %527 = vmatpush1.msra.mxu0 0.0
      %528 = vmatprep.subr.mxu0 0.0
      %529 = vmatpush1.msra.mxu0 0.0
      %530 = vmatprep.subr.mxu0 0.0
      %531 = vmatpush1.msra.mxu0 0.0
      %532 = vmatprep.subr.mxu0 0.0
      %533 = vmatpush1.msra.mxu0 0.0
      %534 = vmatprep.subr.mxu0 0.0
      %535 = vmatpush1.msra.mxu0 0.0
      %536 = vmatprep.subr.mxu0 0.0
      %537 = vmatpush1.msra.mxu0 0.0
      %538 = vmatprep.subr.mxu0 %v511
      %539 = vmatpush1.msra.mxu0 %v508
      %540 = vmatprep.subr.mxu0 %v497
      %541 = vmatpush1.msra.mxu0 %v496
      %542 = vmatprep.subr.mxu0 %v494
      %543 = vmatpush1.msra.mxu0 %v493
      %544 = vmatprep.subr.mxu0 %v491
      %545 = vmatpush1.msra.mxu0 %v490
      %546 = vmatprep.subr.mxu0 %v488
      %547 = vmatpush1.msra.mxu0 %v487
      %548 = vmatprep.subr.mxu0 0.0
      %549 = vmatpush2.msra.mxu0 0.0
      %550 = vmatprep.subr.mxu0 0.0
      %551 = vmatpush2.msra.mxu0 0.0
      %552 = vmatprep.subr.mxu0 0.0
      %553 = vmatpush2.msra.mxu0 0.0
      %554 = vmatprep.subr.mxu0 0.0
      %555 = vmatpush2.msra.mxu0 0.0
      %556 = vmatprep.subr.mxu0 0.0
      %557 = vmatpush2.msra.mxu0 0.0
      %558 = vmatprep.subr.mxu0 0.0
      %559 = vmatpush2.msra.mxu0 0.0
      %560 = vmatprep.subr.mxu0 0.0
      %561 = vmatpush2.msra.mxu0 0.0
      %562 = vmatprep.subr.mxu0 0.0
      %563 = vmatpush2.msra.mxu0 0.0
      %564 = vmatprep.subr.mxu0 0.0
      %565 = vmatpush2.msra.mxu0 0.0
      %566 = vmatprep.subr.mxu0 0.0
      %567 = vmatpush2.msra.mxu0 0.0
      %568 = vmatprep.subr.mxu0 0.0
      %569 = vmatpush2.msra.mxu0 0.0
      %570 = vmatprep.subr.mxu0 0.0
      %571 = vmatpush2.msra.mxu0 0.0
      %572 = vmatprep.subr.mxu0 0.0
      %573 = vmatpush2.msra.mxu0 0.0
      %574 = vmatprep.subr.mxu0 0.0
      %575 = vmatpush2.msra.mxu0 0.0
      %576 = vmatprep.subr.mxu0 0.0
      %577 = vmatpush2.msra.mxu0 0.0
      %578 = vmatprep.subr.mxu0 0.0
      %579 = vmatpush2.msra.mxu0 0.0
      %580 = vmatprep.mubr.f32.mxu0 0.0
      %581 = vmatmul.mubr.f32.gmra.mxu0 %v504
      %v582 = vpop.f32.mrf.mxu0
      %v583 = vadd.f32 0.0, %v582
      %v584 = vpop.f32.mrf.mxu0
      %v585 = vadd.f32 0.0, %v584
      %586 = vdwg.mxu0
      %587 = vmatprep.subr.mxu0 0.0
      %588 = vmatpush1.msra.mxu0 0.0
      %589 = vmatprep.subr.mxu0 0.0
      %590 = vmatpush1.msra.mxu0 0.0
      %591 = vmatprep.subr.mxu0 0.0
      %592 = vmatpush1.msra.mxu0 0.0
      %593 = vmatprep.subr.mxu0 0.0
      %594 = vmatpush1.msra.mxu0 0.0
      %595 = vmatprep.subr.mxu0 0.0
      %596 = vmatpush1.msra.mxu0 0.0
      %597 = vmatprep.subr.mxu0 0.0
      %598 = vmatpush1.msra.mxu0 0.0
      %599 = vmatprep.subr.mxu0 0.0
      %600 = vmatpush1.msra.mxu0 0.0
      %601 = vmatprep.subr.mxu0 0.0
      %602 = vmatpush1.msra.mxu0 0.0
      %603 = vmatprep.subr.mxu0 0.0
      %604 = vmatpush1.msra.mxu0 0.0
      %605 = vmatprep.subr.mxu0 0.0
      %606 = vmatpush1.msra.mxu0 0.0
      %607 = vmatprep.subr.mxu0 0.0
      %608 = vmatpush1.msra.mxu0 0.0
      %609 = vmatprep.subr.mxu0 0.0
      %610 = vmatpush1.msra.mxu0 %v514
      %611 = vmatprep.subr.mxu0 0.0
      %612 = vmatpush1.msra.mxu0 %v498
      %613 = vmatprep.subr.mxu0 0.0
      %614 = vmatpush1.msra.mxu0 %v495
      %615 = vmatprep.subr.mxu0 0.0
      %616 = vmatpush1.msra.mxu0 %v492
      %617 = vmatprep.subr.mxu0 0.0
      %618 = vmatpush1.msra.mxu0 %v489
      %619 = vmatprep.subr.mxu0 0.0
      %620 = vmatpush2.msra.mxu0 0.0
      %621 = vmatprep.subr.mxu0 0.0
      %622 = vmatpush2.msra.mxu0 0.0
      %623 = vmatprep.subr.mxu0 0.0
      %624 = vmatpush2.msra.mxu0 0.0
      %625 = vmatprep.subr.mxu0 0.0
      %626 = vmatpush2.msra.mxu0 0.0
      %627 = vmatprep.subr.mxu0 0.0
      %628 = vmatpush2.msra.mxu0 0.0
      %629 = vmatprep.subr.mxu0 0.0
      %630 = vmatpush2.msra.mxu0 0.0
      %631 = vmatprep.subr.mxu0 0.0
      %632 = vmatpush2.msra.mxu0 0.0
      %633 = vmatprep.subr.mxu0 0.0
      %634 = vmatpush2.msra.mxu0 0.0
      %635 = vmatprep.subr.mxu0 0.0
      %636 = vmatpush2.msra.mxu0 0.0
      %637 = vmatprep.subr.mxu0 0.0
      %638 = vmatpush2.msra.mxu0 0.0
      %639 = vmatprep.subr.mxu0 0.0
      %640 = vmatpush2.msra.mxu0 0.0
      %641 = vmatprep.subr.mxu0 0.0
      %642 = vmatpush2.msra.mxu0 0.0
      %643 = vmatprep.subr.mxu0 0.0
      %644 = vmatpush2.msra.mxu0 0.0
      %645 = vmatprep.subr.mxu0 0.0
      %646 = vmatpush2.msra.mxu0 0.0
      %647 = vmatprep.subr.mxu0 0.0
      %648 = vmatpush2.msra.mxu0 0.0
      %649 = vmatprep.subr.mxu0 0.0
      %650 = vmatpush2.msra.mxu0 0.0
      %651 = vmatprep.mubr.f32.mxu0 0.0
      %652 = vmatmul.mubr.f32.gmra.mxu0 %v504
      %v653 = vpop.f32.mrf.mxu0
      %v654 = vadd.f32 0.0, %v653
      %v655 = vpop.f32.mrf.mxu0
      %656 = vdwg.mxu0
      %s657 = sld [smem:[#allocation4]]
      %v658 = vstv %s657
      %v659 = vmul.f32 %v583, %v658
      %v660 = vmul.f32 %v585, %v658
      %v661 = vmul.f32 %v654, %v658
      %v662 = vld [vmem:[%s3] sm:$0xff]
      %664 = vset.pattern.permute.xlu0 0
      %665 = vperm.xlu0 %664, %v662
      %v666 = vpop.permute.xlu0 %665
      %v668 = vadd.f32 %v659, %v666
      %v669 = vadd.f32 %v660, %v666
      %v670 = vadd.f32 %v661, %v666
      %671 = vst [vmem:[%s278] sm:$0xff] %v668
      %672 = vst [vmem:[%s278 + $0x8] sm:$0xff] %v669
      %673 = vst [vmem:[%s278 + $0x10] sm:$0xff] %v670
      %s674 = smul.u32 3, %s17
      %p675 = scmp.lt.s32.totalorder %s674, 5
      %s676 = scalar_select %p675, %s674, 5
      %s677 = smul.addr %s676, 8
      %s678 = scalar_lea.vmem %s5, %s677
      // Predicated region
      $region41: #{spectral_norm_conv2d.3} parent=39 // pred_check
        %p679 = pneg %p154
      $region42: #{spectral_norm_conv2d.3} parent=39 // pred_check_branch
        %681 = sbr.rel (%p679) target = $region44
      $region43: #{spectral_norm_conv2d.3} parent=39 // pred_region
        %s682 = smul.u32 3, %s17
      $region44: #{spectral_norm_conv2d.3} parent=39 // pred_fallthru
        _
    $region40: #{spectral_norm_conv2d.3} parent=5 // pred_fallthru
      _
    %p683 = scmp.le.s32.totalorder 2, %s12
    // Predicated region
    $region45: #{spectral_norm_conv2d.3} parent=5 // pred_check
      %p684 = pneg %p683
    $region46: #{spectral_norm_conv2d.3} parent=5 // pred_check_branch
      %686 = sbr.rel (%p684) target = $region48
    $region47: #{spectral_norm_conv2d.3} parent=5 // pred_region
      %s687 = ssub.s32 %s12, 2
      // Predicated region
      $region49: #{spectral_norm_conv2d.3} parent=47 // pred_check
        %p688 = pneg %p160
      $region50: #{spectral_norm_conv2d.3} parent=47 // pred_check_branch
        %690 = sbr.rel (%p688) target = $region52
      $region51: #{spectral_norm_conv2d.3} parent=47 // pred_region
        %s691 = smul.u32 3, %s18
        %p692 = scmp.lt.s32.totalorder %s691, 5
        %s693 = scalar_select %p692, %s691, 5
        %s694 = smul.addr %s693, 8
        %s695 = scalar_lea.vmem %s5, %s694
      $region52: #{spectral_norm_conv2d.3} parent=47 // pred_fallthru
        _
    $region48: #{spectral_norm_conv2d.3} parent=5 // pred_fallthru
      _
  $region6: #{spectral_norm_conv2d.3} parent=0 // loop_footer
    %s16 = sadd.s32 1, %s12
  $region7: #{spectral_norm_conv2d.3} parent=0 // loop_footer_branch
    %11 = sbr.rel target = $region3
  $region8: #{spectral_norm_conv2d.3} parent=0 // loop_exit
    _

</llo_original>
